<compile_context>
chip_gen: v5e
topology: v5e:2x2
jax: 0.10.0
libtpu: 0.0.40
codegen_flags: <defaults>
</compile_context>

<pallas_src>
import jax
import jax.numpy as jnp
from jax.experimental import pallas as pl
from jax.experimental.pallas import tpu as pltpu

LANE = 128      # lane width: every feature dim padded to one full vreg lane tile
SUBLANE = 8     # sublane granularity for the batch dim


def mlp_kernel(x_ref, w_ref, o_ref):
    """Fused L-layer MLP over one batch tile.

    x_ref: (TB, 128) activations, ones-lane at lane 127 (for folded biases).
    w_ref: (L, 128, 128) packed weight slab (biases in row 127), VMEM-resident.
    o_ref: (TB, 128) lane-dense output (real outputs live in lanes [0, out)).
    """
    h = x_ref[...].astype(jnp.float32)
    n_layers = w_ref.shape[0]
    for l in range(n_layers):                        # static unroll, L = 5
        h = jnp.dot(h, w_ref[l], preferred_element_type=jnp.float32)
        if l < n_layers - 1:
            h = jnp.maximum(h, 0.0)                  # ReLU (ones lane stays 1)
    o_ref[...] = h.astype(o_ref.dtype)


def pack_params(params, width=LANE):
    """Pack (W, b) pairs into one zero-padded (L, width, width) f32 slab.

    W (in, out) goes to [:in, :out]; b goes to row width-1, and
    [width-1, width-1] = 1 so the activations' ones-lane survives each layer.
    """
    n_layers = len(params)
    slab = jnp.zeros((n_layers, width, width), jnp.float32)
    for l, (w, b) in enumerate(params):
        k, n = w.shape
        slab = slab.at[l, :k, :n].set(w)
        slab = slab.at[l, width - 1, :n].set(b.reshape(-1))
        slab = slab.at[l, width - 1, width - 1].set(1.0)
    return slab


def model2_forward(x, params, *, block_batch=1024):
    """params: list of (W, b) with W shaped (in, out), b shaped (out,)."""
    batch, in_features = x.shape
    out_features = params[-1][0].shape[1]
    n_layers = len(params)

    # Batch tile: multiple of 8, capped at block_batch.
    batch_pad = max(SUBLANE, ((batch + SUBLANE - 1) // SUBLANE) * SUBLANE)
    tb = min(block_batch, batch_pad)
    batch_pad = ((batch_pad + tb - 1) // tb) * tb

    # Lane-pad x to 128 and install the ones-lane used for bias folding.
    xp = jnp.zeros((batch_pad, LANE), x.dtype)
    xp = xp.at[:batch, :in_features].set(x)
    xp = xp.at[:batch, LANE - 1].set(1.0)

    w_slab = pack_params(params)

    out = pl.pallas_call(
        mlp_kernel,
        out_shape=jax.ShapeDtypeStruct((batch_pad, LANE), x.dtype),
        grid=(batch_pad // tb,),
        in_specs=[
            pl.BlockSpec((tb, LANE), lambda i: (i, 0)),                  # stream batch tiles
            pl.BlockSpec((n_layers, LANE, LANE), lambda i: (0, 0, 0)),   # weights resident
        ],
        out_specs=pl.BlockSpec((tb, LANE), lambda i: (i, 0)),
        compiler_params=pltpu.CompilerParams(
            dimension_semantics=("parallel",),   # shard batch grid across TCs
        ),
    )(xp, w_slab)

    # Kernel stores lane-dense; the narrow slice happens outside the kernel.
    return out[:batch, :out_features]


def init_params(key, dims):
    """Deterministic PyTorch-style Linear init: U(-1/sqrt(fan_in), 1/sqrt(fan_in))."""
    params = []
    for fan_in, fan_out in zip(dims[:-1], dims[1:]):
        key, kw, kb = jax.random.split(key, 3)
        bound = 1.0 / jnp.sqrt(float(fan_in))
        # Stored transposed relative to torch (in, out) so the kernel does x @ W.
        w = jax.random.uniform(kw, (fan_in, fan_out), jnp.float32, -bound, bound)
        b = jax.random.uniform(kb, (fan_out,), jnp.float32, -bound, bound)
        params.append((w, b))
    return params


def reference_forward(x, params):
    h = x
    for i, (w, b) in enumerate(params):
        h = h @ w + b
        if i < len(params) - 1:
            h = jnp.maximum(h, 0.0)
    return h


if __name__ == "__main__":
    # Model2 dims: in=4, h1=8, h2=4, h3=6, h4=7, out=3
    dims = (4, 8, 4, 6, 7, 3)
    batch = 8

    key = jax.random.PRNGKey(0)
    key, kx = jax.random.split(key)
    x = jax.random.normal(kx, (batch, dims[0]), jnp.float32)
    params = init_params(key, dims)

    out = model2_forward(x, params)
    out = jax.block_until_ready(out)

    ref = reference_forward(x, params)
    assert out.shape == (batch, dims[-1])
    assert jnp.allclose(out, ref, atol=1e-5, rtol=1e-5), float(
        jnp.max(jnp.abs(out - ref)))

    print("KERNEL_OK")
</pallas_src>

<mosaic_0001>
module attributes {stable_mosaic.version = 11 : i64} {
  func.func @mlp_kernel(%arg0: i32, %arg1: memref<8x128xf32, #tpu.memory_space<vmem>>, %arg2: memref<5x128x128xf32, #tpu.memory_space<vmem>>, %arg3: memref<8x128xf32, #tpu.memory_space<vmem>>) attributes {dimension_semantics = [#tpu.dimension_semantics<parallel>], iteration_bounds = array<i64: 1>, scalar_prefetch = 0 : i64, scratch_operands = 0 : i64, tpu.core_type = #tpu.core_type<tc>, window_params = [{transform_indices = @transform_0, window_bounds = array<i64: 8, 128>}, {pipeline_mode = #tpu.pipeline_mode<synchronous>, transform_indices = @transform_1, window_bounds = array<i64: 5, 128, 128>}, {transform_indices = @transform_2, window_bounds = array<i64: 8, 128>}]} {
    %c0 = arith.constant 0 : index
    %c0_0 = arith.constant 0 : index
    %0 = vector.load %arg1[%c0, %c0_0] : memref<8x128xf32, #tpu.memory_space<vmem>>, vector<8x128xf32>
    %c0_1 = arith.constant 0 : index
    %c0_2 = arith.constant 0 : index
    %c0_3 = arith.constant 0 : index
    %1 = vector.load %arg2[%c0_1, %c0_2, %c0_3] : memref<5x128x128xf32, #tpu.memory_space<vmem>>, vector<1x128x128xf32>
    %2 = vector.shape_cast %1 : vector<1x128x128xf32> to vector<128x128xf32>
    %cst = arith.constant dense<0.000000e+00> : vector<8x128xf32>
    %3 = tpu.matmul %0, %2, %cst {dimension_numbers = #tpu.dot_dimension_numbers<[1], [0], [0], [1], [0, 0, 1, 1], [], []>} : vector<8x128xf32>, vector<128x128xf32>, vector<8x128xf32> -> vector<8x128xf32>
    %cst_4 = arith.constant 0.000000e+00 : f32
    %4 = vector.broadcast %cst_4 : f32 to vector<8x128xf32>
    %5 = arith.maximumf %3, %4 : vector<8x128xf32>
    %c1 = arith.constant 1 : index
    %c0_5 = arith.constant 0 : index
    %c0_6 = arith.constant 0 : index
    %6 = vector.load %arg2[%c1, %c0_5, %c0_6] : memref<5x128x128xf32, #tpu.memory_space<vmem>>, vector<1x128x128xf32>
    %7 = vector.shape_cast %6 : vector<1x128x128xf32> to vector<128x128xf32>
    %cst_7 = arith.constant dense<0.000000e+00> : vector<8x128xf32>
    %8 = tpu.matmul %5, %7, %cst_7 {dimension_numbers = #tpu.dot_dimension_numbers<[1], [0], [0], [1], [0, 0, 1, 1], [], []>} : vector<8x128xf32>, vector<128x128xf32>, vector<8x128xf32> -> vector<8x128xf32>
    %cst_8 = arith.constant 0.000000e+00 : f32
    %9 = vector.broadcast %cst_8 : f32 to vector<8x128xf32>
    %10 = arith.maximumf %8, %9 : vector<8x128xf32>
    %c2 = arith.constant 2 : index
    %c0_9 = arith.constant 0 : index
    %c0_10 = arith.constant 0 : index
    %11 = vector.load %arg2[%c2, %c0_9, %c0_10] : memref<5x128x128xf32, #tpu.memory_space<vmem>>, vector<1x128x128xf32>
    %12 = vector.shape_cast %11 : vector<1x128x128xf32> to vector<128x128xf32>
    %cst_11 = arith.constant dense<0.000000e+00> : vector<8x128xf32>
    %13 = tpu.matmul %10, %12, %cst_11 {dimension_numbers = #tpu.dot_dimension_numbers<[1], [0], [0], [1], [0, 0, 1, 1], [], []>} : vector<8x128xf32>, vector<128x128xf32>, vector<8x128xf32> -> vector<8x128xf32>
    %cst_12 = arith.constant 0.000000e+00 : f32
    %14 = vector.broadcast %cst_12 : f32 to vector<8x128xf32>
    %15 = arith.maximumf %13, %14 : vector<8x128xf32>
    %c3 = arith.constant 3 : index
    %c0_13 = arith.constant 0 : index
    %c0_14 = arith.constant 0 : index
    %16 = vector.load %arg2[%c3, %c0_13, %c0_14] : memref<5x128x128xf32, #tpu.memory_space<vmem>>, vector<1x128x128xf32>
    %17 = vector.shape_cast %16 : vector<1x128x128xf32> to vector<128x128xf32>
    %cst_15 = arith.constant dense<0.000000e+00> : vector<8x128xf32>
    %18 = tpu.matmul %15, %17, %cst_15 {dimension_numbers = #tpu.dot_dimension_numbers<[1], [0], [0], [1], [0, 0, 1, 1], [], []>} : vector<8x128xf32>, vector<128x128xf32>, vector<8x128xf32> -> vector<8x128xf32>
    %cst_16 = arith.constant 0.000000e+00 : f32
    %19 = vector.broadcast %cst_16 : f32 to vector<8x128xf32>
    %20 = arith.maximumf %18, %19 : vector<8x128xf32>
    %c4 = arith.constant 4 : index
    %c0_17 = arith.constant 0 : index
    %c0_18 = arith.constant 0 : index
    %21 = vector.load %arg2[%c4, %c0_17, %c0_18] : memref<5x128x128xf32, #tpu.memory_space<vmem>>, vector<1x128x128xf32>
    %22 = vector.shape_cast %21 : vector<1x128x128xf32> to vector<128x128xf32>
    %cst_19 = arith.constant dense<0.000000e+00> : vector<8x128xf32>
    %23 = tpu.matmul %20, %22, %cst_19 {dimension_numbers = #tpu.dot_dimension_numbers<[1], [0], [0], [1], [0, 0, 1, 1], [], []>} : vector<8x128xf32>, vector<128x128xf32>, vector<8x128xf32> -> vector<8x128xf32>
    %c0_20 = arith.constant 0 : index
    %c0_21 = arith.constant 0 : index
    %24 = vector.load %arg3[%c0_20, %c0_21] : memref<8x128xf32, #tpu.memory_space<vmem>>, vector<8x128xf32>
    tpu.vector_store %arg3[%c0_20, %c0_21], %23 {strides = array<i32>} : memref<8x128xf32, #tpu.memory_space<vmem>>, vector<8x128xf32>,
    return
  }
  func.func @transform_0(%arg0: i32) -> (i32, i32) {
    %c0_i32 = arith.constant 0 : i32
    %c0_i32_0 = arith.constant 0 : i32
    return %arg0, %c0_i32 : i32, i32
  }
  func.func @transform_1(%arg0: i32) -> (i32, i32, i32) {
    %c0_i32 = arith.constant 0 : i32
    %c0_i32_0 = arith.constant 0 : i32
    %c0_i32_1 = arith.constant 0 : i32
    %c0_i32_2 = arith.constant 0 : i32
    return %c0_i32, %c0_i32_0, %c0_i32_1 : i32, i32, i32
  }
  func.func @transform_2(%arg0: i32) -> (i32, i32) {
    %c0_i32 = arith.constant 0 : i32
    %c0_i32_0 = arith.constant 0 : i32
    return %arg0, %c0_i32 : i32, i32
  }
}

</mosaic_0001>

<llo_original>
// kernel: tpu_custom_call.1
$region0: #{tpu_custom_call.1}
  #allocation0 [shape = 'u32[]', space=smem, size = 0x4, offset = 0x4, fixed_abs, tag = 'smem constant byte address 0x4 - core index']
  #allocation1 [shape = 'u32[72,128]{1,0:T(1,128)}', space=vmem, size = 0x9000, scoped, tag = 'internal scratch']
  %s0 = inlined_call_operand.hbm [shape: f32[8,128], index: 0, kind: input, shape index: {}]
  %s1 = inlined_call_operand.hbm [shape: f32[5,128,128], index: 1, kind: input, shape index: {}]
  %s2 = inlined_call_operand.hbm [shape: f32[8,128], index: 2, kind: output, shape index: {}]
  %s3 = sld [smem:[#allocation0]]
  $region26: #{tpu_custom_call.1} parent=0
    _
  %s5 = ssub.s32 1, %s3
  %s6 = scalar_select 0, %s5, %s3
  $region1: #{tpu_custom_call.1} parent=0
    #allocation2 [shape = 'u8[4096]{0}', space=vmem, size = 0x1000, scoped, tag = 'input window, operand 0, single buffered']
    #allocation3 [shape = 's32[1]{0}', space=sflag, size = 0x4, scoped, tag = 'scoped memory for tpu_custom_call.1']
    #allocation4 [shape = 's32[1]{0}', space=sflag, size = 0x4, scoped, tag = 'scoped memory for tpu_custom_call.1']
    #allocation5 [shape = 'u8[327680]{0}', space=vmem, size = 0x50000, scoped, tag = 'input window, operand 1, single buffered']
    #allocation6 [shape = 's32[1]{0}', space=sflag, size = 0x4, scoped, tag = 'scoped memory for tpu_custom_call.1']
    #allocation7 [shape = 'u8[4096]{0}', space=vmem, size = 0x1000, scoped, tag = 'output window, operand 0, single buffered']
    %7 = vsyncpa [#allocation3], 0
    %8 = vsyncpa [#allocation6], 0
    %9 = vsyncpa [#allocation4], 0
    // Predicated region
    $region2: #{tpu_custom_call.1} parent=1 // pred_check
      _
    $region3: #{tpu_custom_call.1} parent=1 // pred_check_branch
      %11 = sbr.rel (0) target = $region5
    $region4: #{tpu_custom_call.1} parent=1 // pred_region
      %13 = vsyncadd [#allocation3], 0
      %s15 = sshll.u32 %s0, 4
      %s16 = int_to_ptr.hbm [resolvable:$true] %s15
      %s17 = sshll.u32 [#allocation2], 4
      %s18 = int_to_ptr.vmem [resolvable:$true] %s17
      %20 = dma.hbm_to_vmem [thread:$0]  %s16, 128, %s18, [#allocation3]
    $region5: #{tpu_custom_call.1} parent=1 // pred_fallthru
      _
    // Predicated region
    $region6: #{tpu_custom_call.1} parent=1 // pred_check
      _
    $region7: #{tpu_custom_call.1} parent=1 // pred_check_branch
      %22 = sbr.rel (0) target = $region9
    $region8: #{tpu_custom_call.1} parent=1 // pred_region
      %24 = vsyncadd [#allocation6], 0
      %s25 = sshll.u32 %s1, 4
      %s26 = int_to_ptr.hbm [resolvable:$true] %s25
      %s27 = sshll.u32 [#allocation5], 4
      %s28 = int_to_ptr.vmem [resolvable:$true] %s27
      %33 = dma.hbm_to_vmem [thread:$0]  %s26, 10240, %s28, [#allocation6], 128, 128, 8
    $region9: #{tpu_custom_call.1} parent=1 // pred_fallthru
      _
    // Predicated region
    $region10: #{tpu_custom_call.1} parent=1 // pred_check
      _
    $region11: #{tpu_custom_call.1} parent=1 // pred_check_branch
      %35 = sbr.rel (0) target = $region13
    $region12: #{tpu_custom_call.1} parent=1 // pred_region
      %37 = dma.done [#allocation3], 128
    $region13: #{tpu_custom_call.1} parent=1 // pred_fallthru
      _
    // Predicated region
    $region14: #{tpu_custom_call.1} parent=1 // pred_check
      _
    $region15: #{tpu_custom_call.1} parent=1 // pred_check_branch
      %39 = sbr.rel (0) target = $region17
    $region16: #{tpu_custom_call.1} parent=1 // pred_region
      %41 = dma.done [#allocation6], 10240
    $region17: #{tpu_custom_call.1} parent=1 // pred_fallthru
      _
    %v42 = vld [vmem:[#allocation2] sm:$0xff]
    %v43 = vld [vmem:[#allocation5] sm:$0xff]
    %v44 = vld [vmem:[#allocation5 + $0x8] sm:$0xff]
    %v45 = vld [vmem:[#allocation5 + $0x10] sm:$0xff]
    %v46 = vld [vmem:[#allocation5 + $0x18] sm:$0xff]
    %v47 = vld [vmem:[#allocation5 + $0x20] sm:$0xff]
    %v48 = vld [vmem:[#allocation5 + $0x28] sm:$0xff]
    %v49 = vld [vmem:[#allocation5 + $0x30] sm:$0xff]
    %v50 = vld [vmem:[#allocation5 + $0x38] sm:$0xff]
    %v51 = vld [vmem:[#allocation5 + $0x40] sm:$0xff]
    %v52 = vld [vmem:[#allocation5 + $0x48] sm:$0xff]
    %v53 = vld [vmem:[#allocation5 + $0x50] sm:$0xff]
    %v54 = vld [vmem:[#allocation5 + $0x58] sm:$0xff]
    %v55 = vld [vmem:[#allocation5 + $0x60] sm:$0xff]
    %v56 = vld [vmem:[#allocation5 + $0x68] sm:$0xff]
    %v57 = vld [vmem:[#allocation5 + $0x70] sm:$0xff]
    %v58 = vld [vmem:[#allocation5 + $0x78] sm:$0xff]
    %59 = vmatpush.msra.mxu0 %v58
    %60 = vmatpush.msra.mxu0 %v57
    %61 = vmatpush.msra.mxu0 %v56
    %62 = vmatpush.msra.mxu0 %v55
    %63 = vmatpush.msra.mxu0 %v54
    %64 = vmatpush.msra.mxu0 %v53
    %65 = vmatpush.msra.mxu0 %v52
    %66 = vmatpush.msra.mxu0 %v51
    %67 = vmatpush.msra.mxu0 %v50
    %68 = vmatpush.msra.mxu0 %v49
    %69 = vmatpush.msra.mxu0 %v48
    %70 = vmatpush.msra.mxu0 %v47
    %71 = vmatpush.msra.mxu0 %v46
    %72 = vmatpush.msra.mxu0 %v45
    %73 = vmatpush.msra.mxu0 %v44
    %74 = vmatpush.msra.mxu0 %v43
    %75 = vmatmul.f32.gmra.mxu0 %v42
    %v76 = vpop.f32.mrf.mxu0
    %v77 = vadd.f32 0.0, %v76
    %78 = vdwg.mxu0
    %v79 = vmax.f32 %v77, 0.0
    %s80 = scalar_lea.vmem [#allocation5], 128
    %v81 = vld [vmem:[%s80] sm:$0xff]
    %v82 = vld [vmem:[%s80 + $0x8] sm:$0xff]
    %v83 = vld [vmem:[%s80 + $0x10] sm:$0xff]
    %v84 = vld [vmem:[%s80 + $0x18] sm:$0xff]
    %v85 = vld [vmem:[%s80 + $0x20] sm:$0xff]
    %v86 = vld [vmem:[%s80 + $0x28] sm:$0xff]
    %v87 = vld [vmem:[%s80 + $0x30] sm:$0xff]
    %v88 = vld [vmem:[%s80 + $0x38] sm:$0xff]
    %v89 = vld [vmem:[%s80 + $0x40] sm:$0xff]
    %v90 = vld [vmem:[%s80 + $0x48] sm:$0xff]
    %v91 = vld [vmem:[%s80 + $0x50] sm:$0xff]
    %v92 = vld [vmem:[%s80 + $0x58] sm:$0xff]
    %v93 = vld [vmem:[%s80 + $0x60] sm:$0xff]
    %v94 = vld [vmem:[%s80 + $0x68] sm:$0xff]
    %v95 = vld [vmem:[%s80 + $0x70] sm:$0xff]
    %v96 = vld [vmem:[%s80 + $0x78] sm:$0xff]
    %97 = vmatpush.msra.mxu0 %v96
    %98 = vmatpush.msra.mxu0 %v95
    %99 = vmatpush.msra.mxu0 %v94
    %100 = vmatpush.msra.mxu0 %v93
    %101 = vmatpush.msra.mxu0 %v92
    %102 = vmatpush.msra.mxu0 %v91
    %103 = vmatpush.msra.mxu0 %v90
    %104 = vmatpush.msra.mxu0 %v89
    %105 = vmatpush.msra.mxu0 %v88
    %106 = vmatpush.msra.mxu0 %v87
    %107 = vmatpush.msra.mxu0 %v86
    %108 = vmatpush.msra.mxu0 %v85
    %109 = vmatpush.msra.mxu0 %v84
    %110 = vmatpush.msra.mxu0 %v83
    %111 = vmatpush.msra.mxu0 %v82
    %112 = vmatpush.msra.mxu0 %v81
    %113 = vmatmul.f32.gmra.mxu0 %v79
    %v114 = vpop.f32.mrf.mxu0
    %v115 = vadd.f32 0.0, %v114
    %116 = vdwg.mxu0
    %v117 = vmax.f32 %v115, 0.0
    %s118 = scalar_lea.vmem [#allocation5], 256
    %v119 = vld [vmem:[%s118] sm:$0xff]
    %v120 = vld [vmem:[%s118 + $0x8] sm:$0xff]
    %v121 = vld [vmem:[%s118 + $0x10] sm:$0xff]
    %v122 = vld [vmem:[%s118 + $0x18] sm:$0xff]
    %v123 = vld [vmem:[%s118 + $0x20] sm:$0xff]
    %v124 = vld [vmem:[%s118 + $0x28] sm:$0xff]
    %v125 = vld [vmem:[%s118 + $0x30] sm:$0xff]
    %v126 = vld [vmem:[%s118 + $0x38] sm:$0xff]
    %v127 = vld [vmem:[%s118 + $0x40] sm:$0xff]
    %v128 = vld [vmem:[%s118 + $0x48] sm:$0xff]
    %v129 = vld [vmem:[%s118 + $0x50] sm:$0xff]
    %v130 = vld [vmem:[%s118 + $0x58] sm:$0xff]
    %v131 = vld [vmem:[%s118 + $0x60] sm:$0xff]
    %v132 = vld [vmem:[%s118 + $0x68] sm:$0xff]
    %v133 = vld [vmem:[%s118 + $0x70] sm:$0xff]
    %v134 = vld [vmem:[%s118 + $0x78] sm:$0xff]
    %135 = vmatpush.msra.mxu0 %v134
    %136 = vmatpush.msra.mxu0 %v133
    %137 = vmatpush.msra.mxu0 %v132
    %138 = vmatpush.msra.mxu0 %v131
    %139 = vmatpush.msra.mxu0 %v130
    %140 = vmatpush.msra.mxu0 %v129
    %141 = vmatpush.msra.mxu0 %v128
    %142 = vmatpush.msra.mxu0 %v127
    %143 = vmatpush.msra.mxu0 %v126
    %144 = vmatpush.msra.mxu0 %v125
    %145 = vmatpush.msra.mxu0 %v124
    %146 = vmatpush.msra.mxu0 %v123
    %147 = vmatpush.msra.mxu0 %v122
    %148 = vmatpush.msra.mxu0 %v121
    %149 = vmatpush.msra.mxu0 %v120
    %150 = vmatpush.msra.mxu0 %v119
    %151 = vmatmul.f32.gmra.mxu0 %v117
    %v152 = vpop.f32.mrf.mxu0
    %v153 = vadd.f32 0.0, %v152
    %154 = vdwg.mxu0
    %v155 = vmax.f32 %v153, 0.0
    %s156 = scalar_lea.vmem [#allocation5], 384
    %v157 = vld [vmem:[%s156] sm:$0xff]
    %v158 = vld [vmem:[%s156 + $0x8] sm:$0xff]
    %v159 = vld [vmem:[%s156 + $0x10] sm:$0xff]
    %v160 = vld [vmem:[%s156 + $0x18] sm:$0xff]
    %v161 = vld [vmem:[%s156 + $0x20] sm:$0xff]
    %v162 = vld [vmem:[%s156 + $0x28] sm:$0xff]
    %v163 = vld [vmem:[%s156 + $0x30] sm:$0xff]
    %v164 = vld [vmem:[%s156 + $0x38] sm:$0xff]
    %v165 = vld [vmem:[%s156 + $0x40] sm:$0xff]
    %v166 = vld [vmem:[%s156 + $0x48] sm:$0xff]
    %v167 = vld [vmem:[%s156 + $0x50] sm:$0xff]
    %v168 = vld [vmem:[%s156 + $0x58] sm:$0xff]
    %v169 = vld [vmem:[%s156 + $0x60] sm:$0xff]
    %v170 = vld [vmem:[%s156 + $0x68] sm:$0xff]
    %v171 = vld [vmem:[%s156 + $0x70] sm:$0xff]
    %v172 = vld [vmem:[%s156 + $0x78] sm:$0xff]
    %173 = vmatpush.msra.mxu0 %v172
    %174 = vmatpush.msra.mxu0 %v171
    %175 = vmatpush.msra.mxu0 %v170
    %176 = vmatpush.msra.mxu0 %v169
    %177 = vmatpush.msra.mxu0 %v168
    %178 = vmatpush.msra.mxu0 %v167
    %179 = vmatpush.msra.mxu0 %v166
    %180 = vmatpush.msra.mxu0 %v165
    %181 = vmatpush.msra.mxu0 %v164
    %182 = vmatpush.msra.mxu0 %v163
    %183 = vmatpush.msra.mxu0 %v162
    %184 = vmatpush.msra.mxu0 %v161
    %185 = vmatpush.msra.mxu0 %v160
    %186 = vmatpush.msra.mxu0 %v159
    %187 = vmatpush.msra.mxu0 %v158
    %188 = vmatpush.msra.mxu0 %v157
    %189 = vmatmul.f32.gmra.mxu0 %v155
    %v190 = vpop.f32.mrf.mxu0
    %v191 = vadd.f32 0.0, %v190
    %192 = vdwg.mxu0
    %v193 = vmax.f32 %v191, 0.0
    %s194 = scalar_lea.vmem [#allocation5], 512
    %v195 = vld [vmem:[%s194] sm:$0xff]
    %v196 = vld [vmem:[%s194 + $0x8] sm:$0xff]
    %v197 = vld [vmem:[%s194 + $0x10] sm:$0xff]
    %v198 = vld [vmem:[%s194 + $0x18] sm:$0xff]
    %v199 = vld [vmem:[%s194 + $0x20] sm:$0xff]
    %v200 = vld [vmem:[%s194 + $0x28] sm:$0xff]
    %v201 = vld [vmem:[%s194 + $0x30] sm:$0xff]
    %v202 = vld [vmem:[%s194 + $0x38] sm:$0xff]
    %v203 = vld [vmem:[%s194 + $0x40] sm:$0xff]
    %v204 = vld [vmem:[%s194 + $0x48] sm:$0xff]
    %v205 = vld [vmem:[%s194 + $0x50] sm:$0xff]
    %v206 = vld [vmem:[%s194 + $0x58] sm:$0xff]
    %v207 = vld [vmem:[%s194 + $0x60] sm:$0xff]
    %v208 = vld [vmem:[%s194 + $0x68] sm:$0xff]
    %v209 = vld [vmem:[%s194 + $0x70] sm:$0xff]
    %v210 = vld [vmem:[%s194 + $0x78] sm:$0xff]
    %211 = vmatpush.msra.mxu0 %v210
    %212 = vmatpush.msra.mxu0 %v209
    %213 = vmatpush.msra.mxu0 %v208
    %214 = vmatpush.msra.mxu0 %v207
    %215 = vmatpush.msra.mxu0 %v206
    %216 = vmatpush.msra.mxu0 %v205
    %217 = vmatpush.msra.mxu0 %v204
    %218 = vmatpush.msra.mxu0 %v203
    %219 = vmatpush.msra.mxu0 %v202
    %220 = vmatpush.msra.mxu0 %v201
    %221 = vmatpush.msra.mxu0 %v200
    %222 = vmatpush.msra.mxu0 %v199
    %223 = vmatpush.msra.mxu0 %v198
    %224 = vmatpush.msra.mxu0 %v197
    %225 = vmatpush.msra.mxu0 %v196
    %226 = vmatpush.msra.mxu0 %v195
    %227 = vmatmul.f32.gmra.mxu0 %v193
    %v228 = vpop.f32.mrf.mxu0
    %v229 = vadd.f32 0.0, %v228
    %230 = vdwg.mxu0
    %231 = vst [vmem:[#allocation7] sm:$0xff] %v229
    // Predicated region
    $region18: #{tpu_custom_call.1} parent=1 // pred_check
      _
    $region19: #{tpu_custom_call.1} parent=1 // pred_check_branch
      %233 = sbr.rel (0) target = $region21
    $region20: #{tpu_custom_call.1} parent=1 // pred_region
      %235 = vsyncadd [#allocation4], 0
      %s237 = sshll.u32 [#allocation7], 4
      %s238 = int_to_ptr.vmem [resolvable:$true] %s237
      %s239 = sshll.u32 %s2, 4
      %s240 = int_to_ptr.hbm [resolvable:$true] %s239
      %242 = dma.vmem_to_hbm [thread:$0]  %s238, 128, %s240, [#allocation4]
    $region21: #{tpu_custom_call.1} parent=1 // pred_fallthru
      _
    // Predicated region
    $region22: #{tpu_custom_call.1} parent=1 // pred_check
      _
    $region23: #{tpu_custom_call.1} parent=1 // pred_check_branch
      %244 = sbr.rel (0) target = $region25
    $region24: #{tpu_custom_call.1} parent=1 // pred_region
      %246 = dma.done [#allocation4], 128
    $region25: #{tpu_custom_call.1} parent=1 // pred_fallthru
      _
    %247 = vsyncpa [#allocation3], 1
    %248 = vsyncpa [#allocation6], 1
    %249 = vsyncpa [#allocation4], 1

</llo_original>
